<compile_context>
chip_gen: v7x
topology: tpu7x:2x2x1
jax: 0.10.0
libtpu: 0.0.40
codegen_flags: <defaults>
</compile_context>

<pallas_src>
import functools
import math

import jax
import jax.numpy as jnp
from jax.experimental import pallas as pl
from jax.experimental.pallas import tpu as pltpu


def _gelu_tanh(x):
    # GELU (tanh approximation), matching the custom GELU() module:
    # 0.5 * x * (1 + tanh(sqrt(2/pi) * (x + 0.044715 * x^3)))
    c = math.sqrt(2.0 / math.pi)
    return 0.5 * x * (1.0 + jnp.tanh(c * (x + 0.044715 * x * x * x)))


def _round_up(n, m):
    return ((n + m - 1) // m) * m


def _vmem_capacity_bytes():
    """Physical VMEM of the attached TPU generation (64 MiB fallback)."""
    try:
        return int(pltpu.get_tpu_info().vmem_capacity_bytes)
    except Exception:
        return 64 * 1024 * 1024  # conservative (v7x per-TensorCore)


# ---------------------------------------------------------------------------
# Kernels.  Grid is (tokens/tm, hidden/tn): the 4*embed hidden dim is a
# streamed reduction axis ("arbitrary", last); weights are never fully VMEM
# resident.  Partial fc2 products are accumulated in f32.
# ---------------------------------------------------------------------------
def ffn_kernel_accout(x_ref, w1_ref, b1_ref, w2_ref, b2_ref, o_ref):
    """f32-output variant: accumulate directly into the resident output tile
    (no separate f32 scratch -> smaller VMEM footprint)."""
    k = pl.program_id(1)

    @pl.when(k == 0)
    def _init():
        o_ref[...] = jnp.zeros_like(o_ref)

    # fc1 partial: (tm, D) @ (D, tn) + (1, tn), f32 accumulation on the MXU.
    # x tile is already in the weight streaming dtype (bf16 fast path).
    h = jnp.dot(x_ref[...], w1_ref[...],
                preferred_element_type=jnp.float32) + b1_ref[...]
    g = _gelu_tanh(h)  # f32 on the VPU/EUP
    # fc2 partial: (tm, tn) @ (tn, D); g cast to the weight dtype for the MXU.
    o_ref[...] += jnp.dot(g.astype(w2_ref.dtype), w2_ref[...],
                          preferred_element_type=jnp.float32)

    @pl.when(k == pl.num_programs(1) - 1)
    def _finalize():
        o_ref[...] += b2_ref[...]


def ffn_kernel_scratch(x_ref, w1_ref, b1_ref, w2_ref, b2_ref, o_ref, acc_ref):
    """Generic variant for non-f32 outputs: f32 VMEM accumulator scratch."""
    k = pl.program_id(1)

    @pl.when(k == 0)
    def _init():
        acc_ref[...] = jnp.zeros_like(acc_ref)

    h = jnp.dot(x_ref[...], w1_ref[...],
                preferred_element_type=jnp.float32) + b1_ref[...]
    g = _gelu_tanh(h)
    acc_ref[...] += jnp.dot(g.astype(w2_ref.dtype), w2_ref[...],
                            preferred_element_type=jnp.float32)

    @pl.when(k == pl.num_programs(1) - 1)
    def _finalize():
        o_ref[...] = (acc_ref[...] + b2_ref[...]).astype(o_ref.dtype)


# ---------------------------------------------------------------------------
# One-time parameter preparation (outside the per-call path).
# ---------------------------------------------------------------------------
def prepare_ffn_params(w1, b1, w2, b2, weight_dtype=jnp.bfloat16):
    """Pad pre-transposed Linear weights to 128-multiples and cast them to the
    streaming dtype ONCE (avoids per-call O(D*H) pad/cast HBM traffic).

    w1: (D, 4D), b1: (4D,), w2: (4D, D), b2: (D,).
    bf16 streaming is the default on all of v5e/v6e/v7x (native bf16 MXUs);
    accumulation inside the kernel stays f32.
    """
    D, H = w1.shape
    assert w2.shape == (H, D)
    D_pad = _round_up(D, 128)
    H_pad = _round_up(H, 128)
    w1p = jnp.pad(w1, ((0, D_pad - D), (0, H_pad - H))).astype(weight_dtype)
    w2p = jnp.pad(w2, ((0, H_pad - H), (0, D_pad - D))).astype(weight_dtype)
    # Biases stay f32: added to f32 pre-GELU activations / f32 accumulator.
    b1p = jnp.pad(b1.astype(jnp.float32), (0, H_pad - H)).reshape(1, H_pad)
    b2p = jnp.pad(b2.astype(jnp.float32), (0, D_pad - D)).reshape(1, D_pad)
    return w1p, b1p, w2p, b2p


# ---------------------------------------------------------------------------
# Forward pass.
# ---------------------------------------------------------------------------
@functools.partial(jax.jit, static_argnames=("tm", "tn"))
def feed_forward(x, w1p, b1p, w2p, b2p, *, tm=512, tn=256):
    """x: (..., D). Returns the same shape.  Parameters come pre-padded / cast
    from prepare_ffn_params (w1p: (D_pad, H_pad), w2p: (H_pad, D_pad))."""
    orig_shape = x.shape
    D = orig_shape[-1]
    D_pad, H_pad = w1p.shape

    x2d = x.reshape(-1, D)
    M = x2d.shape[0]
    out_dtype = x.dtype

    # Stream the fc1 activation operand in the weight dtype (bf16 fast path);
    # accumulation is f32 regardless.
    compute_dtype = w1p.dtype if w1p.dtype != jnp.float32 else x.dtype

    # ---- tile selection -----------------------------------------------------
    tn_eff = min(tn, H_pad)
    while H_pad % tn_eff != 0:
        tn_eff -= 128

    M_rounded = _round_up(M, 8)
    tm_eff = min(tm, M_rounded)
    # Megacore balance (v7x has 2 TensorCores): keep >= 2 token tiles whenever
    # there is enough work, rather than one big tile on one core.
    if M_rounded >= 16:
        tm_eff = min(tm_eff, _round_up((M_rounded + 1) // 2, 8))

    use_scratch = out_dtype != jnp.float32

    cb = jnp.dtype(compute_dtype).itemsize
    wb = jnp.dtype(w1p.dtype).itemsize
    ob = jnp.dtype(out_dtype).itemsize

    def vmem_need(tm_e, tn_e):
        return (2 * tm_e * D_pad * cb            # x tile (double-buffered)
                + 2 * D_pad * tn_e * wb          # w1 tile
                + 2 * tn_e * D_pad * wb          # w2 tile
                + 2 * 8 * tn_e * 4               # b1 (sublane-padded)
                + 2 * 8 * D_pad * 4              # b2
                + 2 * tm_e * D_pad * ob          # out tile
                + (tm_e * D_pad * 4 if use_scratch else 0))  # acc scratch

    # Generation-aware VMEM budget (~15% headroom: ~54 MiB v7x, ~109 MiB v6e).
    cap = int(0.85 * _vmem_capacity_bytes())
    # Graceful tile fallback instead of a compile failure at huge D.
    while vmem_need(tm_eff, tn_eff) > cap and tm_eff > 8:
        tm_eff = max(8, _round_up(tm_eff // 2, 8))
    while vmem_need(tm_eff, tn_eff) > cap and tn_eff > 128:
        tn_eff = max(128, tn_eff // 2)
        while H_pad % tn_eff != 0:
            tn_eff -= 128

    M_pad = _round_up(M, tm_eff)
    n_i = M_pad // tm_eff
    n_k = H_pad // tn_eff

    need = vmem_need(tm_eff, tn_eff)
    vmem_limit = int(min(max(2 * need, 32 * 1024 * 1024), cap))
    vmem_limit = max(vmem_limit, need)

    # ---- per-call input prep (only the activation; weights are pre-padded) --
    x2p = x2d.astype(compute_dtype) if compute_dtype != x2d.dtype else x2d
    if (M_pad, D_pad) != (M, D):
        x2p = jnp.pad(x2p, ((0, M_pad - M), (0, D_pad - D)))

    # Weights are re-streamed once per token tile -> reflect that in the cost.
    cost = pl.CostEstimate(
        flops=4 * M_pad * D_pad * H_pad,          # two matmuls, 2 flops/MAC
        transcendentals=M_pad * H_pad,            # one tanh per hidden act
        bytes_accessed=(x2p.size * cb
                        + n_i * (w1p.size + w2p.size) * wb
                        + n_i * (b1p.size + b2p.size) * 4
                        + M_pad * D_pad * ob),
    )

    in_specs = [
        pl.BlockSpec((tm_eff, D_pad), lambda i, k: (i, 0)),   # x tile
        pl.BlockSpec((D_pad, tn_eff), lambda i, k: (0, k)),   # w1 tile
        pl.BlockSpec((1, tn_eff), lambda i, k: (0, k)),       # b1 tile
        pl.BlockSpec((tn_eff, D_pad), lambda i, k: (k, 0)),   # w2 tile
        pl.BlockSpec((1, D_pad), lambda i, k: (0, 0)),        # b2 (const)
        # NOTE: b2 / the output tile could be single-buffered via
        # pipeline_mode=pl.Buffered(1) to reclaim a bit more VMEM on v7x;
        # omitted for portability across JAX versions.
    ]
    out_spec = pl.BlockSpec((tm_eff, D_pad), lambda i, k: (i, 0))

    kernel = ffn_kernel_scratch if use_scratch else ffn_kernel_accout
    scratch = [pltpu.VMEM((tm_eff, D_pad), jnp.float32)] if use_scratch else []

    out = pl.pallas_call(
        kernel,
        out_shape=jax.ShapeDtypeStruct((M_pad, D_pad), out_dtype),
        grid_spec=pltpu.PrefetchScalarGridSpec(
            num_scalar_prefetch=0,
            grid=(n_i, n_k),
            in_specs=in_specs,
            out_specs=out_spec,
            scratch_shapes=scratch,
        ),
        compiler_params=pltpu.CompilerParams(
            dimension_semantics=("parallel", "arbitrary"),
            vmem_limit_bytes=vmem_limit,
        ),
        cost_estimate=cost,
    )(x2p, w1p, b1p, w2p, b2p)

    return out[:M, :D].reshape(orig_shape)


def feed_forward_ref(x, w1, b1, w2, b2):
    h = x @ w1 + b1
    g = _gelu_tanh(h)
    return g @ w2 + b2


if __name__ == "__main__":
    # Small shapes: batch=2, seq=8, embed_dim=32 -> hidden = 4*32 = 128
    batch, seq, embed_dim = 2, 8, 32
    hidden = 4 * embed_dim

    key = jax.random.PRNGKey(0)
    kx, k1, kb1, k2, kb2 = jax.random.split(key, 5)

    x = jax.random.normal(kx, (batch, seq, embed_dim), dtype=jnp.float32)
    # PyTorch Linear weights would be (out,in); stored here pre-transposed (in,out).
    w1 = jax.random.normal(k1, (embed_dim, hidden), dtype=jnp.float32) * 0.02
    b1 = jax.random.normal(kb1, (hidden,), dtype=jnp.float32) * 0.01
    w2 = jax.random.normal(k2, (hidden, embed_dim), dtype=jnp.float32) * 0.02
    b2 = jax.random.normal(kb2, (embed_dim,), dtype=jnp.float32) * 0.01

    ref = feed_forward_ref(x, w1, b1, w2, b2)

    # f32 weight streaming: tight check (exercises the accumulate-in-output kernel).
    p_f32 = prepare_ffn_params(w1, b1, w2, b2, weight_dtype=jnp.float32)
    out_f32 = feed_forward(x, *p_f32)
    jax.block_until_ready(out_f32)
    assert out_f32.shape == x.shape
    assert jnp.allclose(out_f32, ref, atol=1e-5, rtol=1e-5), "f32 mismatch vs reference"

    # Default bf16 streaming (weights + fc1/fc2 operands bf16, f32 accumulation):
    # remaining error is bf16 operand quantization -> loose tolerance.
    p_bf16 = prepare_ffn_params(w1, b1, w2, b2)   # weight_dtype defaults to bf16
    out_bf16 = feed_forward(x, *p_bf16)
    jax.block_until_ready(out_bf16)
    assert jnp.allclose(out_bf16, ref, atol=2e-2, rtol=2e-2), "bf16 mismatch vs reference"

    # bf16 activations in/out (exercises the f32-scratch accumulator kernel).
    out_bf16_io = feed_forward(x.astype(jnp.bfloat16), *p_bf16)
    jax.block_until_ready(out_bf16_io)
    assert jnp.allclose(out_bf16_io.astype(jnp.float32), ref, atol=3e-2, rtol=3e-2), \
        "bf16 i/o mismatch vs reference"

    print("KERNEL_OK")
</pallas_src>

<mosaic_0001>
module attributes {stable_mosaic.version = 11 : i64} {
  func.func @ffn_kernel_accout(%arg0: i32, %arg1: i32, %arg2: memref<8x128xf32, #tpu.memory_space<vmem>>, %arg3: memref<128x128xf32, #tpu.memory_space<vmem>>, %arg4: memref<1x128xf32, #tpu.memory_space<vmem>>, %arg5: memref<128x128xf32, #tpu.memory_space<vmem>>, %arg6: memref<1x128xf32, #tpu.memory_space<vmem>>, %arg7: memref<8x128xf32, #tpu.memory_space<vmem>>) attributes {dimension_semantics = [#tpu.dimension_semantics<parallel>, #tpu.dimension_semantics<arbitrary>], iteration_bounds = array<i64: 2, 1>, scalar_prefetch = 0 : i64, scratch_operands = 0 : i64, tpu.core_type = #tpu.core_type<tc>, window_params = [{transform_indices = @transform_0, window_bounds = array<i64: 8, 128>}, {transform_indices = @transform_1, window_bounds = array<i64: 128, 128>}, {transform_indices = @transform_2, window_bounds = array<i64: 1, 128>}, {transform_indices = @transform_3, window_bounds = array<i64: 128, 128>}, {pipeline_mode = #tpu.pipeline_mode<synchronous>, transform_indices = @transform_4, window_bounds = array<i64: 1, 128>}, {transform_indices = @transform_5, window_bounds = array<i64: 8, 128>}]} {
    %c0_i32 = arith.constant 0 : i32
    %0 = arith.cmpi eq, %arg1, %c0_i32 : i32
    %1 = arith.extui %0 : i1 to i32
    %c0_i32_0 = arith.constant 0 : i32
    %2 = arith.cmpi ne, %1, %c0_i32_0 : i32
    scf.if %2 {
      %cst_19 = arith.constant 0.000000e+00 : f32
      %30 = vector.broadcast %cst_19 : f32 to vector<8x128xf32>
      %c0_20 = arith.constant 0 : index
      %c0_21 = arith.constant 0 : index
      %31 = vector.load %arg7[%c0_20, %c0_21] : memref<8x128xf32, #tpu.memory_space<vmem>>, vector<8x128xf32>
      tpu.vector_store %arg7[%c0_20, %c0_21], %30 {strides = array<i32>} : memref<8x128xf32, #tpu.memory_space<vmem>>, vector<8x128xf32>,
    } else {
    }
    %c0 = arith.constant 0 : index
    %c0_1 = arith.constant 0 : index
    %3 = vector.load %arg2[%c0, %c0_1] : memref<8x128xf32, #tpu.memory_space<vmem>>, vector<8x128xf32>
    %c0_2 = arith.constant 0 : index
    %c0_3 = arith.constant 0 : index
    %4 = vector.load %arg3[%c0_2, %c0_3] : memref<128x128xf32, #tpu.memory_space<vmem>>, vector<128x128xf32>
    %cst = arith.constant dense<0.000000e+00> : vector<8x128xf32>
    %5 = tpu.matmul %3, %4, %cst {dimension_numbers = #tpu.dot_dimension_numbers<[1], [0], [0], [1], [0, 0, 1, 1], [], []>} : vector<8x128xf32>, vector<128x128xf32>, vector<8x128xf32> -> vector<8x128xf32>
    %c0_4 = arith.constant 0 : index
    %c0_5 = arith.constant 0 : index
    %6 = vector.load %arg4[%c0_4, %c0_5] : memref<1x128xf32, #tpu.memory_space<vmem>>, vector<1x128xf32>
    %7 = vector.broadcast %6 : vector<1x128xf32> to vector<8x128xf32>
    %8 = arith.addf %5, %7 : vector<8x128xf32>
    %cst_6 = arith.constant 5.000000e-01 : f32
    %9 = vector.broadcast %cst_6 : f32 to vector<8x128xf32>
    %10 = arith.mulf %9, %8 : vector<8x128xf32>
    %cst_7 = arith.constant 4.471500e-02 : f32
    %11 = vector.broadcast %cst_7 : f32 to vector<8x128xf32>
    %12 = arith.mulf %11, %8 : vector<8x128xf32>
    %13 = arith.mulf %12, %8 : vector<8x128xf32>
    %14 = arith.mulf %13, %8 : vector<8x128xf32>
    %15 = arith.addf %8, %14 : vector<8x128xf32>
    %cst_8 = arith.constant 0.797884583 : f32
    %16 = vector.broadcast %cst_8 : f32 to vector<8x128xf32>
    %17 = arith.mulf %16, %15 : vector<8x128xf32>
    %18 = math.tanh %17 : vector<8x128xf32>
    %cst_9 = arith.constant 1.000000e+00 : f32
    %19 = vector.broadcast %cst_9 : f32 to vector<8x128xf32>
    %20 = arith.addf %19, %18 : vector<8x128xf32>
    %21 = arith.mulf %10, %20 : vector<8x128xf32>
    %c0_10 = arith.constant 0 : index
    %c0_11 = arith.constant 0 : index
    %22 = vector.load %arg7[%c0_10, %c0_11] : memref<8x128xf32, #tpu.memory_space<vmem>>, vector<8x128xf32>
    %c0_12 = arith.constant 0 : index
    %c0_13 = arith.constant 0 : index
    %23 = vector.load %arg5[%c0_12, %c0_13] : memref<128x128xf32, #tpu.memory_space<vmem>>, vector<128x128xf32>
    %cst_14 = arith.constant dense<0.000000e+00> : vector<8x128xf32>
    %24 = tpu.matmul %21, %23, %cst_14 {dimension_numbers = #tpu.dot_dimension_numbers<[1], [0], [0], [1], [0, 0, 1, 1], [], []>} : vector<8x128xf32>, vector<128x128xf32>, vector<8x128xf32> -> vector<8x128xf32>
    %25 = arith.addf %22, %24 : vector<8x128xf32>
    %c0_15 = arith.constant 0 : index
    %c0_16 = arith.constant 0 : index
    %26 = vector.load %arg7[%c0_15, %c0_16] : memref<8x128xf32, #tpu.memory_space<vmem>>, vector<8x128xf32>
    tpu.vector_store %arg7[%c0_15, %c0_16], %25 {strides = array<i32>} : memref<8x128xf32, #tpu.memory_space<vmem>>, vector<8x128xf32>,
    %c0_i32_17 = arith.constant 0 : i32
    %27 = arith.cmpi eq, %arg1, %c0_i32_17 : i32
    %28 = arith.extui %27 : i1 to i32
    %c0_i32_18 = arith.constant 0 : i32
    %29 = arith.cmpi ne, %28, %c0_i32_18 : i32
    scf.if %29 {
      %c0_19 = arith.constant 0 : index
      %c0_20 = arith.constant 0 : index
      %30 = vector.load %arg7[%c0_19, %c0_20] : memref<8x128xf32, #tpu.memory_space<vmem>>, vector<8x128xf32>
      %c0_21 = arith.constant 0 : index
      %c0_22 = arith.constant 0 : index
      %31 = vector.load %arg6[%c0_21, %c0_22] : memref<1x128xf32, #tpu.memory_space<vmem>>, vector<1x128xf32>
      %32 = vector.broadcast %31 : vector<1x128xf32> to vector<8x128xf32>
      %33 = arith.addf %30, %32 : vector<8x128xf32>
      %c0_23 = arith.constant 0 : index
      %c0_24 = arith.constant 0 : index
      %34 = vector.load %arg7[%c0_23, %c0_24] : memref<8x128xf32, #tpu.memory_space<vmem>>, vector<8x128xf32>
      tpu.vector_store %arg7[%c0_23, %c0_24], %33 {strides = array<i32>} : memref<8x128xf32, #tpu.memory_space<vmem>>, vector<8x128xf32>,
    } else {
    }
    return
  }
  func.func @transform_0(%arg0: i32, %arg1: i32) -> (i32, i32) {
    %c0_i32 = arith.constant 0 : i32
    %c0_i32_0 = arith.constant 0 : i32
    return %arg0, %c0_i32 : i32, i32
  }
  func.func @transform_1(%arg0: i32, %arg1: i32) -> (i32, i32) {
    %c0_i32 = arith.constant 0 : i32
    %c0_i32_0 = arith.constant 0 : i32
    return %c0_i32, %arg1 : i32, i32
  }
  func.func @transform_2(%arg0: i32, %arg1: i32) -> (i32, i32) {
    %c0_i32 = arith.constant 0 : i32
    %c0_i32_0 = arith.constant 0 : i32
    return %c0_i32, %arg1 : i32, i32
  }
  func.func @transform_3(%arg0: i32, %arg1: i32) -> (i32, i32) {
    %c0_i32 = arith.constant 0 : i32
    %c0_i32_0 = arith.constant 0 : i32
    return %arg1, %c0_i32 : i32, i32
  }
  func.func @transform_4(%arg0: i32, %arg1: i32) -> (i32, i32) {
    %c0_i32 = arith.constant 0 : i32
    %c0_i32_0 = arith.constant 0 : i32
    %c0_i32_1 = arith.constant 0 : i32
    return %c0_i32, %c0_i32_0 : i32, i32
  }
  func.func @transform_5(%arg0: i32, %arg1: i32) -> (i32, i32) {
    %c0_i32 = arith.constant 0 : i32
    %c0_i32_0 = arith.constant 0 : i32
    return %arg0, %c0_i32 : i32, i32
  }
}

</mosaic_0001>

<llo_original>
// kernel: feed_forward.1
$region0: #{feed_forward.1}
  #allocation0 [shape = 'u32[]', space=smem, size = 0x4, offset = 0x4, fixed_abs, tag = 'smem constant byte address 0x4 - core index']
  #allocation1 [shape = 'u32[144,128]{1,0:T(1,128)}', space=vmem, size = 0x12000, scoped, tag = 'internal scratch']
  %s0 = inlined_call_operand.vmem [shape: f32[16,128], index: 0, kind: input, shape index: {}]
  %s1 = inlined_call_operand.hbm [shape: f32[128,128], index: 1, kind: input, shape index: {}]
  %s2 = inlined_call_operand.vmem [shape: f32[1,128], index: 2, kind: input, shape index: {}]
  %s3 = inlined_call_operand.hbm [shape: f32[128,128], index: 3, kind: input, shape index: {}]
  %s4 = inlined_call_operand.vmem [shape: f32[1,128], index: 4, kind: input, shape index: {}]
  %s5 = inlined_call_operand.vmem [shape: f32[16,128], index: 5, kind: output, shape index: {}]
  %s6 = sld [smem:[#allocation0]]
  $region69: #{feed_forward.1} parent=0
    _
  %s8 = ssub.s32 1, %s6
  %s9 = scalar_select 0, %s8, %s6
  $region1: #{feed_forward.1} parent=0
    #allocation2 [shape = 'u8[65536]{0}', space=vmem, size = 0x10000, scoped, tag = 'input window, operand 1, single buffered']
    #allocation3 [shape = 's32[2]{0}', space=sflag, size = 0x8, scoped, tag = 'scoped memory for feed_forward.1']
    #allocation4 [shape = 'u8[65536]{0}', space=vmem, size = 0x10000, scoped, tag = 'input window, operand 3, single buffered']
    #allocation5 [shape = 's32[1]{0}', space=sflag, size = 0x4, scoped, tag = 'scoped memory for feed_forward.1']
    %10 = vsyncpa [#allocation3], 0
    %11 = vsyncpa [#allocation5], 0
    loop: start=0, step=1, limit=4
    $region2: #{feed_forward.1} parent=1 // loop_pre_header
      _
    $region3: #{feed_forward.1} parent=1 // loop_header
      %s13 = sphi 0, %s17
      %p14 = scmp.ge.s32.totalorder %s13, 4
      %s20 = sphi 0, %s32
      %s21 = sphi 0, %s28
      %s22 = sphi 0, %s20
      %s23 = sphi 0, %s21
      %s24 = sphi 0, %s22
      %s25 = sphi 0, %s23
      %s35 = sphi 0, %s37
      %s38 = sphi 0, %s35
      %s39 = sphi 0, %s38
      %s55 = sphi 0, %s39
      %s61 = sphi 0, %s63
      %s64 = sphi 0, %s61
      %s65 = sphi 0, %s64
      %s81 = sphi 0, %s65
      %s87 = sphi 0, %s89
      %s90 = sphi 0, %s87
      %s91 = sphi 0, %s90
      %s107 = sphi 0, %s91
      %s113 = sphi 0, %s115
      %s116 = sphi 0, %s113
      %s117 = sphi 0, %s116
      %s133 = sphi 0, %s117
      %s137 = sphi 0, %s137
      %s139 = sphi 0, %s137
      %s140 = sphi 0, %s139
      %s154 = sphi 0, %s140
      %s160 = sphi 0, %s162
      %s163 = sphi 0, %s160
      %s164 = sphi 0, %s163
      %s180 = sphi 0, %s164
    $region4: #{feed_forward.1} parent=1 // loop_header_branch
      %16 = sbr.rel (%p14) target = $region8
    $region5: #{feed_forward.1} parent=1 // loop_body
      %s18 = ssub.s32 %s13, 1
      %s19 = ssub.s32 %s13, 2
      %s26 = sadd.s32 1, %s21
      %p27 = scmp.ge.s32.totalorder %s26, 1
      %s28 = scalar_select %p27, 0, %s26
      %s29 = sadd.s32 1, %s20
      %s30 = scalar_select %p27, %s29, %s20
      %p31 = scmp.ge.s32.totalorder %s30, 2
      %s32 = scalar_select %p31, 0, %s30
      %s33 = ssub.s32 %s20, %s32
      %p34 = scmp.eq.s32.totalorder %s33, 0
      %s36 = sadd.s32 %s35, 1
      %s37 = scalar_select %p34, %s35, %s36
      %p40 = pneg %p34
      %p41 = scmp.eq.s32.totalorder %s13, 1
      %p42 = por %p40, %p41
      %p43 = scmp.ne.s32.totalorder %s35, %s38
      %p44 = scmp.eq.s32.totalorder %s13, 0
      %p45 = por %p43, %p44
      %p46 = scmp.ne.s32.totalorder %s35, %s38
      %p47 = scmp.eq.s32.totalorder %s18, 1
      %p48 = por %p46, %p47
      %p49 = scmp.ne.s32.totalorder %s38, %s39
      %p50 = scmp.eq.s32.totalorder %s18, 0
      %p51 = por %p49, %p50
      %p52 = scmp.ne.s32.totalorder %s38, %s39
      %p53 = scmp.eq.s32.totalorder %s19, 1
      %p54 = por %p52, %p53
      %p56 = scmp.ne.s32.totalorder %s39, %s55
      %p57 = scmp.eq.s32.totalorder %s19, 0
      %p58 = por %p56, %p57
      %s59 = ssub.s32 %s21, %s28
      %p60 = scmp.eq.s32.totalorder %s59, 0
      %s62 = sadd.s32 %s61, 1
      %s63 = scalar_select %p60, %s61, %s62
      %p66 = pneg %p60
      %p67 = scmp.eq.s32.totalorder %s13, 1
      %p68 = por %p66, %p67
      %p69 = scmp.ne.s32.totalorder %s61, %s64
      %p70 = scmp.eq.s32.totalorder %s13, 0
      %p71 = por %p69, %p70
      %p72 = scmp.ne.s32.totalorder %s61, %s64
      %p73 = scmp.eq.s32.totalorder %s18, 1
      %p74 = por %p72, %p73
      %p75 = scmp.ne.s32.totalorder %s64, %s65
      %p76 = scmp.eq.s32.totalorder %s18, 0
      %p77 = por %p75, %p76
      %p78 = scmp.ne.s32.totalorder %s64, %s65
      %p79 = scmp.eq.s32.totalorder %s19, 1
      %p80 = por %p78, %p79
      %p82 = scmp.ne.s32.totalorder %s65, %s81
      %p83 = scmp.eq.s32.totalorder %s19, 0
      %p84 = por %p82, %p83
      %s85 = ssub.s32 %s21, %s28
      %p86 = scmp.eq.s32.totalorder %s85, 0
      %s88 = sadd.s32 %s87, 1
      %s89 = scalar_select %p86, %s87, %s88
      %p92 = pneg %p86
      %p93 = scmp.eq.s32.totalorder %s13, 1
      %p94 = por %p92, %p93
      %p95 = scmp.ne.s32.totalorder %s87, %s90
      %p96 = scmp.eq.s32.totalorder %s13, 0
      %p97 = por %p95, %p96
      %p98 = scmp.ne.s32.totalorder %s87, %s90
      %p99 = scmp.eq.s32.totalorder %s18, 1
      %p100 = por %p98, %p99
      %p101 = scmp.ne.s32.totalorder %s90, %s91
      %p102 = scmp.eq.s32.totalorder %s18, 0
      %p103 = por %p101, %p102
      %p104 = scmp.ne.s32.totalorder %s90, %s91
      %p105 = scmp.eq.s32.totalorder %s19, 1
      %p106 = por %p104, %p105
      %p108 = scmp.ne.s32.totalorder %s91, %s107
      %p109 = scmp.eq.s32.totalorder %s19, 0
      %p110 = por %p108, %p109
      %s111 = ssub.s32 %s21, %s28
      %p112 = scmp.eq.s32.totalorder %s111, 0
      %s114 = sadd.s32 %s113, 1
      %s115 = scalar_select %p112, %s113, %s114
      %p118 = pneg %p112
      %p119 = scmp.eq.s32.totalorder %s13, 1
      %p120 = por %p118, %p119
      %p121 = scmp.ne.s32.totalorder %s113, %s116
      %p122 = scmp.eq.s32.totalorder %s13, 0
      %p123 = por %p121, %p122
      %p124 = scmp.ne.s32.totalorder %s113, %s116
      %p125 = scmp.eq.s32.totalorder %s18, 1
      %p126 = por %p124, %p125
      %p127 = scmp.ne.s32.totalorder %s116, %s117
      %p128 = scmp.eq.s32.totalorder %s18, 0
      %p129 = por %p127, %p128
      %p130 = scmp.ne.s32.totalorder %s116, %s117
      %p131 = scmp.eq.s32.totalorder %s19, 1
      %p132 = por %p130, %p131
      %p134 = scmp.ne.s32.totalorder %s117, %s133
      %p135 = scmp.eq.s32.totalorder %s19, 0
      %p136 = por %p134, %p135
      %s138 = sadd.s32 %s137, 1
      %p141 = scmp.eq.s32.totalorder %s13, 1
      %p142 = scmp.ne.s32.totalorder %s137, %s139
      %p143 = scmp.eq.s32.totalorder %s13, 0
      %p144 = por %p142, %p143
      %p145 = scmp.ne.s32.totalorder %s137, %s139
      %p146 = scmp.eq.s32.totalorder %s18, 1
      %p147 = por %p145, %p146
      %p148 = scmp.ne.s32.totalorder %s139, %s140
      %p149 = scmp.eq.s32.totalorder %s18, 0
      %p150 = por %p148, %p149
      %p151 = scmp.ne.s32.totalorder %s139, %s140
      %p152 = scmp.eq.s32.totalorder %s19, 1
      %p153 = por %p151, %p152
      %p155 = scmp.ne.s32.totalorder %s140, %s154
      %p156 = scmp.eq.s32.totalorder %s19, 0
      %p157 = por %p155, %p156
      %s158 = ssub.s32 %s20, %s32
      %p159 = scmp.eq.s32.totalorder %s158, 0
      %s161 = sadd.s32 %s160, 1
      %s162 = scalar_select %p159, %s160, %s161
      %p165 = pneg %p159
      %p166 = scmp.eq.s32.totalorder %s13, 1
      %p167 = por %p165, %p166
      %p168 = scmp.ne.s32.totalorder %s160, %s163
      %p169 = scmp.eq.s32.totalorder %s13, 0
      %p170 = por %p168, %p169
      %p171 = scmp.ne.s32.totalorder %s160, %s163
      %p172 = scmp.eq.s32.totalorder %s18, 1
      %p173 = por %p171, %p172
      %p174 = scmp.ne.s32.totalorder %s163, %s164
      %p175 = scmp.eq.s32.totalorder %s18, 0
      %p176 = por %p174, %p175
      %p177 = scmp.ne.s32.totalorder %s163, %s164
      %p178 = scmp.eq.s32.totalorder %s19, 1
      %p179 = por %p177, %p178
      %p181 = scmp.ne.s32.totalorder %s164, %s180
      %p182 = scmp.eq.s32.totalorder %s19, 0
      %p183 = por %p181, %p182
      %p184 = scmp.le.s32.totalorder 1, %s13
      %p185 = scmp.lt.s32.totalorder %s13, 3
      %p186 = pnand %p184, %p185
      %p187 = pneg %p186
      // Predicated region
      $region9: #{feed_forward.1} parent=5 // pred_check
        _
      $region10: #{feed_forward.1} parent=5 // pred_check_branch
        %189 = sbr.rel (%p186) target = $region12
      $region11: #{feed_forward.1} parent=5 // pred_region
        %s190 = ssub.s32 %s13, 1
        // Predicated region
        $region13: #{feed_forward.1} parent=11 // pred_check
          %p191 = pneg %p77
        $region14: #{feed_forward.1} parent=11 // pred_check_branch
          %193 = sbr.rel (%p191) target = $region16
        $region15: #{feed_forward.1} parent=11 // pred_region
          %s195 = ssub.s32 2048, 2048
          %196 = vsyncadd [#allocation3], %s195
          %s197 = smul.addr %s23, 128
          %s198 = scalar_lea.hbm %s1, %s197
          %s199 = sshll.u32 [#allocation2], 4
          %s200 = int_to_ptr.vmem [resolvable:$true] %s199
          %205 = dma.hbm_to_vmem [thread:$0]  %s198, 2048, %s200, [#allocation3], 128, 128, 8
        $region16: #{feed_forward.1} parent=11 // pred_fallthru
          _
        // Predicated region
        $region17: #{feed_forward.1} parent=11 // pred_check
          %p206 = pneg %p103
        $region18: #{feed_forward.1} parent=11 // pred_check_branch
          %208 = sbr.rel (%p206) target = $region20
        $region19: #{feed_forward.1} parent=11 // pred_region
          %p209 = scmp.lt.s32.totalorder %s23, 0
          %s210 = scalar_select %p209, %s23, 0
          %s211 = scalar_lea.vmem %s2, %s210
        $region20: #{feed_forward.1} parent=11 // pred_fallthru
          _
        // Predicated region
        $region21: #{feed_forward.1} parent=11 // pred_check
          %p212 = pneg %p129
        $region22: #{feed_forward.1} parent=11 // pred_check_branch
          %214 = sbr.rel (%p212) target = $region24
        $region23: #{feed_forward.1} parent=11 // pred_region
          %s215 = smul.u32 16, %s23
          %s217 = ssub.s32 2048, 2048
          %218 = vsyncadd [#allocation5], %s217
          %s219 = smul.addr %s215, 128
          %s220 = scalar_lea.hbm %s3, %s219
          %s221 = sshll.u32 [#allocation4], 4
          %s222 = int_to_ptr.vmem [resolvable:$true] %s221
          %227 = dma.hbm_to_vmem [thread:$0]  %s220, 2048, %s222, [#allocation5], 128, 128, 8
        $region24: #{feed_forward.1} parent=11 // pred_fallthru
          _
        // Predicated region
        $region25: #{feed_forward.1} parent=11 // pred_check
          %p228 = pneg %p150
        $region26: #{feed_forward.1} parent=11 // pred_check_branch
          %230 = sbr.rel (%p228) target = $region28
        $region27: #{feed_forward.1} parent=11 // pred_region
          _
        $region28: #{feed_forward.1} parent=11 // pred_fallthru
          _
      $region12: #{feed_forward.1} parent=5 // pred_fallthru
        _
      %p231 = scmp.lt.s32.totalorder %s13, 2
      // Predicated region
      $region29: #{feed_forward.1} parent=5 // pred_check
        %p232 = pneg %p231
      $region30: #{feed_forward.1} parent=5 // pred_check_branch
        %234 = sbr.rel (%p232) target = $region32
      $region31: #{feed_forward.1} parent=5 // pred_region
        // Predicated region
        $region33: #{feed_forward.1} parent=31 // pred_check
          %p235 = pneg %p45
        $region34: #{feed_forward.1} parent=31 // pred_check_branch
          %237 = sbr.rel (%p235) target = $region36
        $region35: #{feed_forward.1} parent=31 // pred_region
          %p238 = scmp.lt.s32.totalorder %s20, 1
          %s239 = scalar_select %p238, %s20, 1
          %s240 = smul.addr %s239, 8
          %s241 = scalar_lea.vmem %s0, %s240
        $region36: #{feed_forward.1} parent=31 // pred_fallthru
          _
      $region32: #{feed_forward.1} parent=5 // pred_fallthru
        _
      %p242 = scmp.le.s32.totalorder 1, %s13
      %p243 = scmp.lt.s32.totalorder %s13, 3
      %p244 = pnand %p242, %p243
      %p245 = pneg %p244
      // Predicated region
      $region37: #{feed_forward.1} parent=5 // pred_check
        _
      $region38: #{feed_forward.1} parent=5 // pred_check_branch
        %247 = sbr.rel (%p244) target = $region40
      $region39: #{feed_forward.1} parent=5 // pred_region
        %s248 = ssub.s32 %s13, 1
        // Predicated region
        $region41: #{feed_forward.1} parent=39 // pred_check
          %p249 = pneg %p77
        $region42: #{feed_forward.1} parent=39 // pred_check_branch
          %251 = sbr.rel (%p249) target = $region44
        $region43: #{feed_forward.1} parent=39 // pred_region
          %252 = dma.done [#allocation3], 2048
        $region44: #{feed_forward.1} parent=39 // pred_fallthru
          _
        // Predicated region
        $region45: #{feed_forward.1} parent=39 // pred_check
          %p253 = pneg %p129
        $region46: #{feed_forward.1} parent=39 // pred_check_branch
          %255 = sbr.rel (%p253) target = $region48
        $region47: #{feed_forward.1} parent=39 // pred_region
          %256 = dma.done [#allocation5], 2048
        $region48: #{feed_forward.1} parent=39 // pred_fallthru
          _
        %p257 = scmp.lt.s32.totalorder %s22, 1
        %s258 = scalar_select %p257, %s22, 1
        %s259 = smul.addr %s258, 8
        %s260 = scalar_lea.vmem %s0, %s259
        %p261 = pneg %p51
        %p262 = pneg %p48
        %p263 = pneg %p77
        %p264 = pneg %p74
        %p265 = scmp.lt.s32.totalorder %s23, 0
        %s266 = scalar_select %p265, %s23, 0
        %s267 = scalar_lea.vmem %s2, %s266
        %p268 = pneg %p103
        %p269 = pneg %p100
        %p270 = pneg %p129
        %p271 = pneg %p126
        %p272 = pneg %p150
        %p273 = pneg %p147
        %p274 = pneg %p176
        %p275 = pneg %p173
        %p276 = scmp.lt.s32.totalorder %s22, 1
        %s277 = scalar_select %p276, %s22, 1
        %s278 = smul.addr %s277, 8
        %s279 = scalar_lea.vmem %s5, %s278
        %p280 = scmp.lt.s32.totalorder %s22, 1
        %s281 = scalar_select %p280, %s22, 1
        %s282 = smul.addr %s281, 8
        %s283 = scalar_lea.vmem %s0, %s282
        %p284 = scmp.lt.s32.totalorder %s23, 0
        %s285 = scalar_select %p284, %s23, 0
        %s286 = scalar_lea.vmem %s2, %s285
        %s287 = smul.u32 16, %s23
        %p288 = scmp.lt.s32.totalorder %s22, 1
        %s289 = scalar_select %p288, %s22, 1
        %s290 = smul.addr %s289, 8
        %s291 = scalar_lea.vmem %s5, %s290
        %p292 = scmp.eq.s32.totalorder %s23, 0
        // Predicated region
        $region49: #{feed_forward.1} parent=39 // pred_check
          %p293 = pneg %p292
        $region50: #{feed_forward.1} parent=39 // pred_check_branch
          %295 = sbr.rel (%p293) target = $region52
        $region51: #{feed_forward.1} parent=39 // pred_region
          %296 = vst [vmem:[%s291] sm:$0xff] 0.0
        $region52: #{feed_forward.1} parent=39 // pred_fallthru
          _
        %v297 = vld [vmem:[%s283] sm:$0xff]
        %v298 = vld [vmem:[#allocation2] sm:$0xff]
        %v299 = vld [vmem:[#allocation2 + $0x8] sm:$0xff]
        %v300 = vld [vmem:[#allocation2 + $0x10] sm:$0xff]
        %v301 = vld [vmem:[#allocation2 + $0x18] sm:$0xff]
        %v302 = vld [vmem:[#allocation2 + $0x20] sm:$0xff]
        %v303 = vld [vmem:[#allocation2 + $0x28] sm:$0xff]
        %v304 = vld [vmem:[#allocation2 + $0x30] sm:$0xff]
        %v305 = vld [vmem:[#allocation2 + $0x38] sm:$0xff]
        %v306 = vld [vmem:[#allocation2 + $0x40] sm:$0xff]
        %v307 = vld [vmem:[#allocation2 + $0x48] sm:$0xff]
        %v308 = vld [vmem:[#allocation2 + $0x50] sm:$0xff]
        %v309 = vld [vmem:[#allocation2 + $0x58] sm:$0xff]
        %v310 = vld [vmem:[#allocation2 + $0x60] sm:$0xff]
        %v311 = vld [vmem:[#allocation2 + $0x68] sm:$0xff]
        %v312 = vld [vmem:[#allocation2 + $0x70] sm:$0xff]
        %v313 = vld [vmem:[#allocation2 + $0x78] sm:$0xff]
        %v314 = vld [vmem:[%s286] sm:$0x1]
        %v316 = vlaneseq
        %v317 = vshrl.u32 %v316, 7
        %v318 = vsub.s32 0, %v317
        %v319 = vrot.slane %v314, %v318
        %321 = vmatprep.subr.mxu0 0.0
        %322 = vmatpush1.msra.mxu0 %v298
        %323 = vmatprep.subr.mxu0 0.0
        %324 = vmatpush1.msra.mxu0 %v299
        %325 = vmatprep.subr.mxu0 0.0
        %326 = vmatpush1.msra.mxu0 %v300
        %327 = vmatprep.subr.mxu0 0.0
        %328 = vmatpush1.msra.mxu0 %v301
        %329 = vmatprep.subr.mxu0 0.0
        %330 = vmatpush1.msra.mxu0 %v302
        %331 = vmatprep.subr.mxu0 0.0
        %332 = vmatpush1.msra.mxu0 %v303
        %333 = vmatprep.subr.mxu0 0.0
        %334 = vmatpush1.msra.mxu0 %v304
        %335 = vmatprep.subr.mxu0 0.0
        %336 = vmatpush1.msra.mxu0 %v305
        %337 = vmatprep.subr.mxu0 0.0
        %338 = vmatpush1.msra.mxu0 %v306
        %339 = vmatprep.subr.mxu0 0.0
        %340 = vmatpush1.msra.mxu0 %v307
        %341 = vmatprep.subr.mxu0 0.0
        %342 = vmatpush1.msra.mxu0 %v308
        %343 = vmatprep.subr.mxu0 0.0
        %344 = vmatpush1.msra.mxu0 %v309
        %345 = vmatprep.subr.mxu0 0.0
        %346 = vmatpush1.msra.mxu0 %v310
        %347 = vmatprep.subr.mxu0 0.0
        %348 = vmatpush1.msra.mxu0 %v311
        %349 = vmatprep.subr.mxu0 0.0
        %350 = vmatpush1.msra.mxu0 %v312
        %351 = vmatprep.subr.mxu0 0.0
        %352 = vmatpush1.msra.mxu0 %v313
        %353 = vmatprep.subr.mxu0 0.0
        %354 = vmatpush1.msra.mxu0 0.0
        %355 = vmatprep.subr.mxu0 0.0
        %356 = vmatpush1.msra.mxu0 0.0
        %357 = vmatprep.subr.mxu0 0.0
        %358 = vmatpush1.msra.mxu0 0.0
        %359 = vmatprep.subr.mxu0 0.0
        %360 = vmatpush1.msra.mxu0 0.0
        %361 = vmatprep.subr.mxu0 0.0
        %362 = vmatpush1.msra.mxu0 0.0
        %363 = vmatprep.subr.mxu0 0.0
        %364 = vmatpush1.msra.mxu0 0.0
        %365 = vmatprep.subr.mxu0 0.0
        %366 = vmatpush1.msra.mxu0 0.0
        %367 = vmatprep.subr.mxu0 0.0
        %368 = vmatpush1.msra.mxu0 0.0
        %369 = vmatprep.subr.mxu0 0.0
        %370 = vmatpush1.msra.mxu0 0.0
        %371 = vmatprep.subr.mxu0 0.0
        %372 = vmatpush1.msra.mxu0 0.0
        %373 = vmatprep.subr.mxu0 0.0
        %374 = vmatpush1.msra.mxu0 0.0
        %375 = vmatprep.subr.mxu0 0.0
        %376 = vmatpush1.msra.mxu0 0.0
        %377 = vmatprep.subr.mxu0 0.0
        %378 = vmatpush1.msra.mxu0 0.0
        %379 = vmatprep.subr.mxu0 0.0
        %380 = vmatpush1.msra.mxu0 0.0
        %381 = vmatprep.subr.mxu0 0.0
        %382 = vmatpush1.msra.mxu0 0.0
        %383 = vmatprep.subr.mxu0 0.0
        %384 = vmatpush1.msra.mxu0 0.0
        %385 = vmatprep.mubr.f32.mxu0 0.0
        %386 = vmatmul.mubr.f32.gmra.mrb[0].mxu0 %v297
        %v387 = vpop.f32.mrb[0].mxu0
        %v388 = vadd.f32 %v319, %v387
        %v389 = vpop.f32.mrb[0].mxu0
        %390 = vdwg.mxu0
        %v391 = vmul.f32 %v388, 0.5
        %v392 = vmul.f32 %v388, 0.044715
        %v393 = vmul.f32 %v392, %v388
        %v394 = vmul.f32 %v393, %v388
        %v395 = vadd.f32 %v388, %v394
        %v396 = vmul.f32 %v395, 0.7978846
        %v397 = vtanh.pop %v396
        %v398 = vadd.f32 %v397, 1.0
        %v399 = vmul.f32 %v391, %v398
        %v400 = vld [vmem:[%s291] sm:$0xff]
        %v401 = vld [vmem:[#allocation4] sm:$0xff]
        %v402 = vld [vmem:[#allocation4 + $0x8] sm:$0xff]
        %v403 = vld [vmem:[#allocation4 + $0x10] sm:$0xff]
        %v404 = vld [vmem:[#allocation4 + $0x18] sm:$0xff]
        %v405 = vld [vmem:[#allocation4 + $0x20] sm:$0xff]
        %v406 = vld [vmem:[#allocation4 + $0x28] sm:$0xff]
        %v407 = vld [vmem:[#allocation4 + $0x30] sm:$0xff]
        %v408 = vld [vmem:[#allocation4 + $0x38] sm:$0xff]
        %v409 = vld [vmem:[#allocation4 + $0x40] sm:$0xff]
        %v410 = vld [vmem:[#allocation4 + $0x48] sm:$0xff]
        %v411 = vld [vmem:[#allocation4 + $0x50] sm:$0xff]
        %v412 = vld [vmem:[#allocation4 + $0x58] sm:$0xff]
        %v413 = vld [vmem:[#allocation4 + $0x60] sm:$0xff]
        %v414 = vld [vmem:[#allocation4 + $0x68] sm:$0xff]
        %v415 = vld [vmem:[#allocation4 + $0x70] sm:$0xff]
        %v416 = vld [vmem:[#allocation4 + $0x78] sm:$0xff]
        %417 = vmatprep.subr.mxu0 0.0
        %418 = vmatpush1.msra.mxu0 %v401
        %419 = vmatprep.subr.mxu0 0.0
        %420 = vmatpush1.msra.mxu0 %v402
        %421 = vmatprep.subr.mxu0 0.0
        %422 = vmatpush1.msra.mxu0 %v403
        %423 = vmatprep.subr.mxu0 0.0
        %424 = vmatpush1.msra.mxu0 %v404
        %425 = vmatprep.subr.mxu0 0.0
        %426 = vmatpush1.msra.mxu0 %v405
        %427 = vmatprep.subr.mxu0 0.0
        %428 = vmatpush1.msra.mxu0 %v406
        %429 = vmatprep.subr.mxu0 0.0
        %430 = vmatpush1.msra.mxu0 %v407
        %431 = vmatprep.subr.mxu0 0.0
        %432 = vmatpush1.msra.mxu0 %v408
        %433 = vmatprep.subr.mxu0 0.0
        %434 = vmatpush1.msra.mxu0 %v409
        %435 = vmatprep.subr.mxu0 0.0
        %436 = vmatpush1.msra.mxu0 %v410
        %437 = vmatprep.subr.mxu0 0.0
        %438 = vmatpush1.msra.mxu0 %v411
        %439 = vmatprep.subr.mxu0 0.0
        %440 = vmatpush1.msra.mxu0 %v412
        %441 = vmatprep.subr.mxu0 0.0
        %442 = vmatpush1.msra.mxu0 %v413
        %443 = vmatprep.subr.mxu0 0.0
        %444 = vmatpush1.msra.mxu0 %v414
        %445 = vmatprep.subr.mxu0 0.0
        %446 = vmatpush1.msra.mxu0 %v415
        %447 = vmatprep.subr.mxu0 0.0
        %448 = vmatpush1.msra.mxu0 %v416
        %449 = vmatprep.subr.mxu0 0.0
        %450 = vmatpush1.msra.mxu0 0.0
        %451 = vmatprep.subr.mxu0 0.0
        %452 = vmatpush1.msra.mxu0 0.0
        %453 = vmatprep.subr.mxu0 0.0
        %454 = vmatpush1.msra.mxu0 0.0
        %455 = vmatprep.subr.mxu0 0.0
        %456 = vmatpush1.msra.mxu0 0.0
        %457 = vmatprep.subr.mxu0 0.0
        %458 = vmatpush1.msra.mxu0 0.0
        %459 = vmatprep.subr.mxu0 0.0
        %460 = vmatpush1.msra.mxu0 0.0
        %461 = vmatprep.subr.mxu0 0.0
        %462 = vmatpush1.msra.mxu0 0.0
        %463 = vmatprep.subr.mxu0 0.0
        %464 = vmatpush1.msra.mxu0 0.0
        %465 = vmatprep.subr.mxu0 0.0
        %466 = vmatpush1.msra.mxu0 0.0
        %467 = vmatprep.subr.mxu0 0.0
        %468 = vmatpush1.msra.mxu0 0.0
        %469 = vmatprep.subr.mxu0 0.0
        %470 = vmatpush1.msra.mxu0 0.0
        %471 = vmatprep.subr.mxu0 0.0
        %472 = vmatpush1.msra.mxu0 0.0
        %473 = vmatprep.subr.mxu0 0.0
        %474 = vmatpush1.msra.mxu0 0.0
        %475 = vmatprep.subr.mxu0 0.0
        %476 = vmatpush1.msra.mxu0 0.0
        %477 = vmatprep.subr.mxu0 0.0
        %478 = vmatpush1.msra.mxu0 0.0
        %479 = vmatprep.subr.mxu0 0.0
        %480 = vmatpush1.msra.mxu0 0.0
        %481 = vmatprep.mubr.f32.mxu0 0.0
        %482 = vmatmul.mubr.f32.gmra.mrb[0].mxu0 %v399
        %v483 = vpop.f32.mrb[0].mxu0
        %v484 = vadd.f32 0.0, %v483
        %v485 = vpop.f32.mrb[0].mxu0
        %486 = vdwg.mxu0
        %v487 = vadd.f32 %v400, %v484
        %488 = vst [vmem:[%s291] sm:$0xff] %v487
        // Predicated region
        $region53: #{feed_forward.1} parent=39 // pred_check
          %p489 = pneg %p292
        $region54: #{feed_forward.1} parent=39 // pred_check_branch
          %491 = sbr.rel (%p489) target = $region56
        $region55: #{feed_forward.1} parent=39 // pred_region
          %v492 = vld [vmem:[%s291] sm:$0xff]
          %v493 = vld [vmem:[%s4] sm:$0x1]
          %v495 = vlaneseq
          %v496 = vshrl.u32 %v495, 7
          %v497 = vsub.s32 0, %v496
          %v498 = vrot.slane %v493, %v497
          %v500 = vadd.f32 %v492, %v498
          %501 = vst [vmem:[%s291] sm:$0xff] %v500
        $region56: #{feed_forward.1} parent=39 // pred_fallthru
          _
        %p502 = scmp.lt.s32.totalorder %s22, 1
        %s503 = scalar_select %p502, %s22, 1
        %s504 = smul.addr %s503, 8
        %s505 = scalar_lea.vmem %s5, %s504
        // Predicated region
        $region57: #{feed_forward.1} parent=39 // pred_check
          %p506 = pneg %p173
        $region58: #{feed_forward.1} parent=39 // pred_check_branch
          %508 = sbr.rel (%p506) target = $region60
        $region59: #{feed_forward.1} parent=39 // pred_region
          _
        $region60: #{feed_forward.1} parent=39 // pred_fallthru
          _
      $region40: #{feed_forward.1} parent=5 // pred_fallthru
        _
      %p509 = scmp.le.s32.totalorder 2, %s13
      // Predicated region
      $region61: #{feed_forward.1} parent=5 // pred_check
        %p510 = pneg %p509
      $region62: #{feed_forward.1} parent=5 // pred_check_branch
        %512 = sbr.rel (%p510) target = $region64
      $region63: #{feed_forward.1} parent=5 // pred_region
        %s513 = ssub.s32 %s13, 2
        // Predicated region
        $region65: #{feed_forward.1} parent=63 // pred_check
          %p514 = pneg %p179
        $region66: #{feed_forward.1} parent=63 // pred_check_branch
          %516 = sbr.rel (%p514) target = $region68
        $region67: #{feed_forward.1} parent=63 // pred_region
          %p517 = scmp.lt.s32.totalorder %s24, 1
          %s518 = scalar_select %p517, %s24, 1
          %s519 = smul.addr %s518, 8
          %s520 = scalar_lea.vmem %s5, %s519
        $region68: #{feed_forward.1} parent=63 // pred_fallthru
          _
      $region64: #{feed_forward.1} parent=5 // pred_fallthru
        _
    $region6: #{feed_forward.1} parent=1 // loop_footer
      %s17 = sadd.s32 1, %s13
    $region7: #{feed_forward.1} parent=1 // loop_footer_branch
      %12 = sbr.rel target = $region3
    $region8: #{feed_forward.1} parent=1 // loop_exit
      _
    %521 = vsyncpa [#allocation3], 1
    %s522 = scalar_lea.sflag [#allocation3], 1
    %523 = vsyncpa %s522, 1
    %524 = vsyncpa [#allocation5], 1

</llo_original>
